<compile_context>
chip_gen: v5e
topology: v5e:2x2
jax: 0.10.0
libtpu: 0.0.40
codegen_flags: <defaults>
</compile_context>

<pallas_src>
import functools

import jax
import jax.numpy as jnp
from jax.experimental import pallas as pl
from jax.experimental.pallas import tpu as pltpu

BN_EPS = 1e-5
MAX_TM = 512                      # row (spatial) tile upper bound
MAX_TN = 256                      # output-channel tile upper bound (lane-dense)
VMEM_BUDGET = 40 * 1024 * 1024    # working-set budget (fits v7x's 64 MiB VMEM per TC)


# ----------------------------- Pallas kernels ------------------------------ #
# K is collapsed into the block (single MXU pass per tile): no scratch, no pl.when.

def _mm_bias_relu_kernel(p_ref, w_ref, b_ref, o_ref):
    """out = relu(P @ W + bias); W has the BN scale pre-folded."""
    acc = jnp.dot(p_ref[...], w_ref[...], preferred_element_type=jnp.float32)
    o_ref[...] = jnp.maximum(acc + b_ref[...], 0.0).astype(o_ref.dtype)


def _mm_bias_relu_add_kernel(p_ref, w_ref, b_ref, r_ref, o_ref):
    """out = relu(P @ W + bias) + residual   (identity shortcut, bf16-streamed)."""
    acc = jnp.dot(p_ref[...], w_ref[...], preferred_element_type=jnp.float32)
    y = jnp.maximum(acc + b_ref[...], 0.0) + r_ref[...].astype(jnp.float32)
    o_ref[...] = y.astype(o_ref.dtype)


def _mm_bias_relu_shortcut_kernel(p_ref, w_ref, b_ref,
                                  xs_ref, wsc_ref, bsc_ref, o_ref):
    """out = relu(P @ W + bias) + relu(Xs @ Wsc + bias_sc)   (fused 1x1 shortcut)."""
    acc = jnp.dot(p_ref[...], w_ref[...], preferred_element_type=jnp.float32)
    sc = jnp.dot(xs_ref[...], wsc_ref[...], preferred_element_type=jnp.float32)
    y = jnp.maximum(acc + b_ref[...], 0.0) + jnp.maximum(sc + bsc_ref[...], 0.0)
    o_ref[...] = y.astype(o_ref.dtype)


# ------------------------------ kernel wrapper ------------------------------ #

def _round_up(x, m):
    return (x + m - 1) // m * m


def _pad2(a, rows, cols):
    pr, pc = rows - a.shape[0], cols - a.shape[1]
    if pr == 0 and pc == 0:
        return a
    return jnp.pad(a, ((0, pr), (0, pc)))


def _choose_tile(n, max_tile, align):
    """Largest power-of-two tile <= max_tile that divides round_up(n, align)."""
    n_pad = _round_up(n, align)
    t = max_tile
    while t > align and n_pad % t != 0:
        t //= 2
    return t, _round_up(n_pad, t)


def _shrink_tm(tm, k_pad, tn, out_itemsize):
    """Shrink TM until the double-buffered working set fits the VMEM budget."""
    while tm > 8 and (2 * tm * k_pad * 2          # bf16 patch tile, double-buffered
                      + 2 * k_pad * tn * 2        # bf16 weight tile, double-buffered
                      + 2 * tm * tn * out_itemsize) > VMEM_BUDGET:
        tm //= 2
    return tm


def _conv_mm(p, w, bias, *, out_dtype,
             residual=None, sc_in=None, sc_w=None, sc_bias=None):
    """Tiled fused (M,K)@(K,O) matmul + bias + ReLU (+ residual / fused 1x1 shortcut).

    p: (M, K) bf16 patches, w: (K, O) scale-folded f32 weights, bias: (O,) f32.
    residual: (M, O) identity shortcut, or sc_in/sc_w/sc_bias: fused 1x1-conv shortcut.
    """
    M, K = p.shape
    O = w.shape[1]
    out_itemsize = jnp.dtype(out_dtype).itemsize

    K_pad = _round_up(K, 128)                       # keep MXU passes fully aligned
    TM, M_pad = _choose_tile(M, MAX_TM, 8)          # TM divides M_pad -> no row pad copy
    TN, O_pad = _choose_tile(O, MAX_TN, 128)        # lane-dense output stores
    TM = _shrink_tm(TM, K_pad, TN, out_itemsize)

    p_p = _pad2(p, M_pad, K_pad).astype(jnp.bfloat16)
    w_p = _pad2(w, K_pad, O_pad).astype(jnp.bfloat16)
    b_p = _pad2(bias.reshape(1, O).astype(jnp.float32), 1, O_pad)

    args = [p_p, w_p, b_p]
    in_specs = [
        pl.BlockSpec((TM, K_pad), lambda i, j: (i, 0)),
        pl.BlockSpec((K_pad, TN), lambda i, j: (0, j)),
        pl.BlockSpec((1, TN), lambda i, j: (0, j)),
    ]

    n_i, n_j = M_pad // TM, O_pad // TN
    flops = 2 * M_pad * K_pad * O_pad
    bytes_accessed = (p_p.size * 2 * n_j + w_p.size * 2 * n_i + b_p.size * 4 * n_i
                      + M_pad * O_pad * out_itemsize)

    if sc_in is not None:
        Cin = sc_in.shape[1]
        C_pad = _round_up(Cin, 16)                  # bf16 sublane packing
        xs_p = _pad2(sc_in, M_pad, C_pad).astype(jnp.bfloat16)
        wsc_p = _pad2(sc_w, C_pad, O_pad).astype(jnp.bfloat16)
        bsc_p = _pad2(sc_bias.reshape(1, O).astype(jnp.float32), 1, O_pad)
        args += [xs_p, wsc_p, bsc_p]
        in_specs += [
            pl.BlockSpec((TM, C_pad), lambda i, j: (i, 0)),
            pl.BlockSpec((C_pad, TN), lambda i, j: (0, j)),
            pl.BlockSpec((1, TN), lambda i, j: (0, j)),
        ]
        kernel = _mm_bias_relu_shortcut_kernel
        flops += 2 * M_pad * C_pad * O_pad
        bytes_accessed += xs_p.size * 2 * n_j + wsc_p.size * 2 * n_i + bsc_p.size * 4 * n_i
    elif residual is not None:
        r_p = _pad2(residual, M_pad, O_pad).astype(jnp.bfloat16)   # bf16 residual stream
        args += [r_p]
        in_specs += [pl.BlockSpec((TM, TN), lambda i, j: (i, j))]
        kernel = _mm_bias_relu_add_kernel
        bytes_accessed += r_p.size * 2
    else:
        kernel = _mm_bias_relu_kernel

    grid = (n_i, n_j)

    out = pl.pallas_call(
        kernel,
        out_shape=jax.ShapeDtypeStruct((M_pad, O_pad), out_dtype),
        grid_spec=pltpu.PrefetchScalarGridSpec(
            num_scalar_prefetch=0,
            grid=grid,
            in_specs=in_specs,
            out_specs=pl.BlockSpec((TM, TN), lambda i, j: (i, j)),
        ),
        compiler_params=pltpu.CompilerParams(
            dimension_semantics=("parallel", "parallel"),
            vmem_limit_bytes=48 * 1024 * 1024,
        ),
        cost_estimate=pl.CostEstimate(
            flops=int(flops), transcendentals=0, bytes_accessed=int(bytes_accessed)),
    )(*args)
    return out[:M, :O]


# ------------------------------ JAX glue ----------------------------------- #

def _im2col_3x3(x_nhwc, stride):
    """x: (N,H,W,C) -> patches (N*Ho*Wo, 9*C), patch order (kh, kw, c)."""
    N, H, W, C = x_nhwc.shape
    xp = jnp.pad(x_nhwc, ((0, 0), (1, 1), (1, 1), (0, 0)))
    Ho = (H + 2 - 3) // stride + 1
    Wo = (W + 2 - 3) // stride + 1
    cols = []
    for dh in range(3):
        for dw in range(3):
            sl = xp[:, dh:dh + (Ho - 1) * stride + 1:stride,
                       dw:dw + (Wo - 1) * stride + 1:stride, :]
            cols.append(sl)
    patches = jnp.stack(cols, axis=3)            # (N, Ho, Wo, 9, C)
    return patches.reshape(N * Ho * Wo, 9 * C), Ho, Wo


def _fold_bn(bn):
    scale = bn["gamma"] / jnp.sqrt(bn["var"] + BN_EPS)
    bias = bn["beta"] - bn["mean"] * scale
    return scale, bias


@functools.partial(jax.jit, static_argnames=("stride",))
def resnet_block_forward(x_nchw, params, stride):
    """Pallas implementation of ResnetBlock.forward. Input/output are NCHW f32."""
    x = jnp.transpose(x_nchw, (0, 2, 3, 1)).astype(jnp.float32)  # NHWC internally
    x_bf = x.astype(jnp.bfloat16)
    N, H, W, C = x.shape
    opc = params["w1"].shape[0]

    # trunk conv1 (3x3, stride) + BN + ReLU  -- BN scale folded into the weights,
    # result emitted directly in bf16 by the kernel (feeds conv2's im2col).
    s1, b1 = _fold_bn(params["bn1"])
    w1 = jnp.transpose(params["w1"], (2, 3, 1, 0)).reshape(9 * C, opc) * s1[None, :]
    p1, Ho, Wo = _im2col_3x3(x_bf, stride)
    t1 = _conv_mm(p1, w1, b1, out_dtype=jnp.bfloat16)            # (N*Ho*Wo, opc) bf16

    # trunk conv2 (3x3, stride 1) + BN + ReLU, fused with the shortcut.
    s2, b2 = _fold_bn(params["bn2"])
    w2 = jnp.transpose(params["w2"], (2, 3, 1, 0)).reshape(9 * opc, opc) * s2[None, :]
    p2, _, _ = _im2col_3x3(t1.reshape(N, Ho, Wo, opc), 1)

    if params["shortcut"] is None:
        # identity shortcut (ipc == opc, stride == 1): streamed per-tile in bf16
        res = x_bf.reshape(N * H * W, C)
        out = _conv_mm(p2, w2, b2, out_dtype=jnp.float32, residual=res)
    else:
        # 1x1-conv shortcut fused into the same kernel (no extra HBM round trip)
        ssc, bsc = _fold_bn(params["shortcut"]["bn"])
        wsc = params["shortcut"]["w"].reshape(opc, C).T * ssc[None, :]   # (C, opc)
        xs = x_bf[:, ::stride, ::stride, :].reshape(N * Ho * Wo, C)
        out = _conv_mm(p2, w2, b2, out_dtype=jnp.float32,
                       sc_in=xs, sc_w=wsc, sc_bias=bsc)

    return out.reshape(N, Ho, Wo, opc).transpose(0, 3, 1, 2)     # back to NCHW


# --------------------------- pure-JAX reference ----------------------------- #

def _ref_forward(x, params, stride):
    def conv(x, w, s, pad):
        return jax.lax.conv_general_dilated(
            x, w, (s, s), [(pad, pad), (pad, pad)],
            dimension_numbers=("NCHW", "OIHW", "NCHW"))

    def bn_relu(x, bn):
        sc = bn["gamma"] / jnp.sqrt(bn["var"] + BN_EPS)
        bi = bn["beta"] - bn["mean"] * sc
        return jnp.maximum(x * sc[None, :, None, None] + bi[None, :, None, None], 0.0)

    t = bn_relu(conv(x, params["w1"], stride, 1), params["bn1"])
    t = bn_relu(conv(t, params["w2"], 1, 1), params["bn2"])
    if params["shortcut"] is None:
        s = x
    else:
        s = bn_relu(conv(x, params["shortcut"]["w"], stride, 0), params["shortcut"]["bn"])
    return t + s


# --------------------------------- main ------------------------------------ #

def _make_bn(keys, c):
    return dict(
        gamma=jax.random.uniform(keys[0], (c,), jnp.float32, 0.5, 1.5),
        beta=jax.random.normal(keys[1], (c,), jnp.float32) * 0.1,
        mean=jax.random.normal(keys[2], (c,), jnp.float32) * 0.1,
        var=jax.random.uniform(keys[3], (c,), jnp.float32, 0.5, 1.5),
    )


def _make_params(key, ipc, opc, stride):
    ks = jax.random.split(key, 15)
    return dict(
        w1=jax.random.normal(ks[0], (opc, ipc, 3, 3), jnp.float32) * 0.1,
        bn1=_make_bn(ks[1:5], opc),
        w2=jax.random.normal(ks[5], (opc, opc, 3, 3), jnp.float32) * 0.1,
        bn2=_make_bn(ks[6:10], opc),
        shortcut=None if (ipc == opc and stride == 1) else dict(
            w=jax.random.normal(ks[10], (opc, ipc, 1, 1), jnp.float32) * 0.1,
            bn=_make_bn(ks[11:15], opc),
        ),
    )


def _check(x, params, stride, tag):
    out = jax.block_until_ready(resnet_block_forward(x, params, stride))
    ref = _ref_forward(x, params, stride)
    assert out.shape == ref.shape, (tag, out.shape, ref.shape)
    err = float(jnp.max(jnp.abs(out - ref)))
    assert bool(jnp.allclose(out, ref, atol=5e-2, rtol=5e-2)), f"{tag}: max abs err {err}"


if __name__ == "__main__":
    key = jax.random.PRNGKey(0)
    k_a, k_b, k_xa, k_xb = jax.random.split(key, 4)

    # Downsampling block with 1x1-conv shortcut (ipc != opc, stride 2).
    params_a = _make_params(k_a, 4, 8, 2)
    x_a = jax.random.normal(k_xa, (2, 4, 16, 16), jnp.float32)   # NCHW, like PyTorch
    _check(x_a, params_a, 2, "shortcut")

    # Identity-shortcut block (ipc == opc, stride 1) — exercises the residual path.
    params_b = _make_params(k_b, 8, 8, 1)
    x_b = jax.random.normal(k_xb, (2, 8, 16, 16), jnp.float32)
    _check(x_b, params_b, 1, "identity")

    print("KERNEL_OK")
</pallas_src>

<mosaic_0001>
module attributes {stable_mosaic.version = 11 : i64} {
  func.func @_mm_bias_relu_kernel(%arg0: i32, %arg1: i32, %arg2: memref<128x128xbf16, #tpu.memory_space<vmem>>, %arg3: memref<128x128xbf16, #tpu.memory_space<vmem>>, %arg4: memref<1x128xf32, #tpu.memory_space<vmem>>, %arg5: memref<128x128xbf16, #tpu.memory_space<vmem>>) attributes {dimension_semantics = [#tpu.dimension_semantics<parallel>, #tpu.dimension_semantics<parallel>], iteration_bounds = array<i64: 1, 1>, scalar_prefetch = 0 : i64, scratch_operands = 0 : i64, tpu.core_type = #tpu.core_type<tc>, window_params = [{transform_indices = @transform_0, window_bounds = array<i64: 128, 128>}, {transform_indices = @transform_1, window_bounds = array<i64: 128, 128>}, {transform_indices = @transform_2, window_bounds = array<i64: 1, 128>}, {transform_indices = @transform_3, window_bounds = array<i64: 128, 128>}]} {
    %c0 = arith.constant 0 : index
    %c0_0 = arith.constant 0 : index
    %0 = vector.load %arg2[%c0, %c0_0] : memref<128x128xbf16, #tpu.memory_space<vmem>>, vector<128x128xbf16>
    %c0_1 = arith.constant 0 : index
    %c0_2 = arith.constant 0 : index
    %1 = vector.load %arg3[%c0_1, %c0_2] : memref<128x128xbf16, #tpu.memory_space<vmem>>, vector<128x128xbf16>
    %cst = arith.constant dense<0.000000e+00> : vector<128x128xf32>
    %2 = tpu.matmul %0, %1, %cst {dimension_numbers = #tpu.dot_dimension_numbers<[1], [0], [0], [1], [0, 0, 1, 1], [], []>} : vector<128x128xbf16>, vector<128x128xbf16>, vector<128x128xf32> -> vector<128x128xf32>
    %c0_3 = arith.constant 0 : index
    %c0_4 = arith.constant 0 : index
    %3 = vector.load %arg4[%c0_3, %c0_4] : memref<1x128xf32, #tpu.memory_space<vmem>>, vector<1x128xf32>
    %4 = vector.broadcast %3 : vector<1x128xf32> to vector<128x128xf32>
    %5 = arith.addf %2, %4 : vector<128x128xf32>
    %cst_5 = arith.constant 0.000000e+00 : f32
    %6 = vector.broadcast %cst_5 : f32 to vector<128x128xf32>
    %7 = arith.maximumf %5, %6 : vector<128x128xf32>
    %8 = arith.truncf %7 : vector<128x128xf32> to vector<128x128xbf16>
    %c0_6 = arith.constant 0 : index
    %c0_7 = arith.constant 0 : index
    %9 = vector.load %arg5[%c0_6, %c0_7] : memref<128x128xbf16, #tpu.memory_space<vmem>>, vector<128x128xbf16>
    tpu.vector_store %arg5[%c0_6, %c0_7], %8 {strides = array<i32>} : memref<128x128xbf16, #tpu.memory_space<vmem>>, vector<128x128xbf16>,
    return
  }
  func.func @transform_0(%arg0: i32, %arg1: i32) -> (i32, i32) {
    %c0_i32 = arith.constant 0 : i32
    %c0_i32_0 = arith.constant 0 : i32
    return %arg0, %c0_i32 : i32, i32
  }
  func.func @transform_1(%arg0: i32, %arg1: i32) -> (i32, i32) {
    %c0_i32 = arith.constant 0 : i32
    %c0_i32_0 = arith.constant 0 : i32
    return %c0_i32, %arg1 : i32, i32
  }
  func.func @transform_2(%arg0: i32, %arg1: i32) -> (i32, i32) {
    %c0_i32 = arith.constant 0 : i32
    %c0_i32_0 = arith.constant 0 : i32
    return %c0_i32, %arg1 : i32, i32
  }
  func.func @transform_3(%arg0: i32, %arg1: i32) -> (i32, i32) {
    %c0_i32 = arith.constant 0 : i32
    return %arg0, %arg1 : i32, i32
  }
}

module attributes {stable_mosaic.version = 11 : i64} {
  func.func @_mm_bias_relu_shortcut_kernel(%arg0: i32, %arg1: i32, %arg2: memref<128x128xbf16, #tpu.memory_space<vmem>>, %arg3: memref<128x128xbf16, #tpu.memory_space<vmem>>, %arg4: memref<1x128xf32, #tpu.memory_space<vmem>>, %arg5: memref<128x16xbf16, #tpu.memory_space<vmem>>, %arg6: memref<16x128xbf16, #tpu.memory_space<vmem>>, %arg7: memref<1x128xf32, #tpu.memory_space<vmem>>, %arg8: memref<128x128xf32, #tpu.memory_space<vmem>>) attributes {dimension_semantics = [#tpu.dimension_semantics<parallel>, #tpu.dimension_semantics<parallel>], iteration_bounds = array<i64: 1, 1>, scalar_prefetch = 0 : i64, scratch_operands = 0 : i64, tpu.core_type = #tpu.core_type<tc>, window_params = [{transform_indices = @transform_0, window_bounds = array<i64: 128, 128>}, {transform_indices = @transform_1, window_bounds = array<i64: 128, 128>}, {transform_indices = @transform_2, window_bounds = array<i64: 1, 128>}, {transform_indices = @transform_3, window_bounds = array<i64: 128, 16>}, {transform_indices = @transform_4, window_bounds = array<i64: 16, 128>}, {transform_indices = @transform_5, window_bounds = array<i64: 1, 128>}, {transform_indices = @transform_6, window_bounds = array<i64: 128, 128>}]} {
    %c0 = arith.constant 0 : index
    %c0_0 = arith.constant 0 : index
    %0 = vector.load %arg2[%c0, %c0_0] : memref<128x128xbf16, #tpu.memory_space<vmem>>, vector<128x128xbf16>
    %c0_1 = arith.constant 0 : index
    %c0_2 = arith.constant 0 : index
    %1 = vector.load %arg3[%c0_1, %c0_2] : memref<128x128xbf16, #tpu.memory_space<vmem>>, vector<128x128xbf16>
    %cst = arith.constant dense<0.000000e+00> : vector<128x128xf32>
    %2 = tpu.matmul %0, %1, %cst {dimension_numbers = #tpu.dot_dimension_numbers<[1], [0], [0], [1], [0, 0, 1, 1], [], []>} : vector<128x128xbf16>, vector<128x128xbf16>, vector<128x128xf32> -> vector<128x128xf32>
    %c0_3 = arith.constant 0 : index
    %c0_4 = arith.constant 0 : index
    %3 = vector.load %arg5[%c0_3, %c0_4] : memref<128x16xbf16, #tpu.memory_space<vmem>>, vector<128x16xbf16>
    %c0_5 = arith.constant 0 : index
    %c0_6 = arith.constant 0 : index
    %4 = vector.load %arg6[%c0_5, %c0_6] : memref<16x128xbf16, #tpu.memory_space<vmem>>, vector<16x128xbf16>
    %cst_7 = arith.constant dense<0.000000e+00> : vector<128x128xf32>
    %5 = tpu.matmul %3, %4, %cst_7 {dimension_numbers = #tpu.dot_dimension_numbers<[1], [0], [0], [1], [0, 0, 1, 1], [], []>} : vector<128x16xbf16>, vector<16x128xbf16>, vector<128x128xf32> -> vector<128x128xf32>
    %c0_8 = arith.constant 0 : index
    %c0_9 = arith.constant 0 : index
    %6 = vector.load %arg4[%c0_8, %c0_9] : memref<1x128xf32, #tpu.memory_space<vmem>>, vector<1x128xf32>
    %7 = vector.broadcast %6 : vector<1x128xf32> to vector<128x128xf32>
    %8 = arith.addf %2, %7 : vector<128x128xf32>
    %cst_10 = arith.constant 0.000000e+00 : f32
    %9 = vector.broadcast %cst_10 : f32 to vector<128x128xf32>
    %10 = arith.maximumf %8, %9 : vector<128x128xf32>
    %c0_11 = arith.constant 0 : index
    %c0_12 = arith.constant 0 : index
    %11 = vector.load %arg7[%c0_11, %c0_12] : memref<1x128xf32, #tpu.memory_space<vmem>>, vector<1x128xf32>
    %12 = vector.broadcast %11 : vector<1x128xf32> to vector<128x128xf32>
    %13 = arith.addf %5, %12 : vector<128x128xf32>
    %cst_13 = arith.constant 0.000000e+00 : f32
    %14 = vector.broadcast %cst_13 : f32 to vector<128x128xf32>
    %15 = arith.maximumf %13, %14 : vector<128x128xf32>
    %16 = arith.addf %10, %15 : vector<128x128xf32>
    %c0_14 = arith.constant 0 : index
    %c0_15 = arith.constant 0 : index
    %17 = vector.load %arg8[%c0_14, %c0_15] : memref<128x128xf32, #tpu.memory_space<vmem>>, vector<128x128xf32>
    tpu.vector_store %arg8[%c0_14, %c0_15], %16 {strides = array<i32>} : memref<128x128xf32, #tpu.memory_space<vmem>>, vector<128x128xf32>,
    return
  }
  func.func @transform_0(%arg0: i32, %arg1: i32) -> (i32, i32) {
    %c0_i32 = arith.constant 0 : i32
    %c0_i32_0 = arith.constant 0 : i32
    return %arg0, %c0_i32 : i32, i32
  }
  func.func @transform_1(%arg0: i32, %arg1: i32) -> (i32, i32) {
    %c0_i32 = arith.constant 0 : i32
    %c0_i32_0 = arith.constant 0 : i32
    return %c0_i32, %arg1 : i32, i32
  }
  func.func @transform_2(%arg0: i32, %arg1: i32) -> (i32, i32) {
    %c0_i32 = arith.constant 0 : i32
    %c0_i32_0 = arith.constant 0 : i32
    return %c0_i32, %arg1 : i32, i32
  }
  func.func @transform_3(%arg0: i32, %arg1: i32) -> (i32, i32) {
    %c0_i32 = arith.constant 0 : i32
    %c0_i32_0 = arith.constant 0 : i32
    return %arg0, %c0_i32 : i32, i32
  }
  func.func @transform_4(%arg0: i32, %arg1: i32) -> (i32, i32) {
    %c0_i32 = arith.constant 0 : i32
    %c0_i32_0 = arith.constant 0 : i32
    return %c0_i32, %arg1 : i32, i32
  }
  func.func @transform_5(%arg0: i32, %arg1: i32) -> (i32, i32) {
    %c0_i32 = arith.constant 0 : i32
    %c0_i32_0 = arith.constant 0 : i32
    return %c0_i32, %arg1 : i32, i32
  }
  func.func @transform_6(%arg0: i32, %arg1: i32) -> (i32, i32) {
    %c0_i32 = arith.constant 0 : i32
    return %arg0, %arg1 : i32, i32
  }
}

</mosaic_0001>

<llo_original>
// kernel: resnet_block_forward.2
$region0: #{resnet_block_forward.2}
  #allocation0 [shape = 'u32[]', space=smem, size = 0x4, offset = 0x4, fixed_abs, tag = 'smem constant byte address 0x4 - core index']
  #allocation1 [shape = 'u32[72,128]{1,0:T(1,128)}', space=vmem, size = 0x9000, scoped, tag = 'internal scratch']
  %s0 = inlined_call_operand.vmem [shape: bf16[128,128], index: 0, kind: input, shape index: {}]
  %s1 = inlined_call_operand.vmem [shape: bf16[128,128], index: 1, kind: input, shape index: {}]
  %s2 = inlined_call_operand.vmem [shape: f32[1,128], index: 2, kind: input, shape index: {}]
  %s3 = inlined_call_operand.vmem [shape: bf16[128,128], index: 3, kind: output, shape index: {}]
  %s4 = sld [smem:[#allocation0]]
  $region22: #{resnet_block_forward.2} parent=0
    _
  %s6 = ssub.s32 1, %s4
  %s7 = scalar_select 0, %s6, %s4
  // Predicated region
  $region2: #{resnet_block_forward.2} parent=0 // pred_check
    _
  $region3: #{resnet_block_forward.2} parent=0 // pred_check_branch
    %9 = sbr.rel (0) target = $region5
  $region4: #{resnet_block_forward.2} parent=0 // pred_region
    _
  $region5: #{resnet_block_forward.2} parent=0 // pred_fallthru
    _
  // Predicated region
  $region6: #{resnet_block_forward.2} parent=0 // pred_check
    _
  $region7: #{resnet_block_forward.2} parent=0 // pred_check_branch
    %11 = sbr.rel (0) target = $region9
  $region8: #{resnet_block_forward.2} parent=0 // pred_region
    _
  $region9: #{resnet_block_forward.2} parent=0 // pred_fallthru
    _
  // Predicated region
  $region10: #{resnet_block_forward.2} parent=0 // pred_check
    _
  $region11: #{resnet_block_forward.2} parent=0 // pred_check_branch
    %13 = sbr.rel (0) target = $region13
  $region12: #{resnet_block_forward.2} parent=0 // pred_region
    _
  $region13: #{resnet_block_forward.2} parent=0 // pred_fallthru
    _
  %v14 = vld [vmem:[%s0] sm:$0xf]
  %v15 = vld [vmem:[%s0 + $0x4] sm:$0xf]
  %v16 = vld [vmem:[%s0 + $0x8] sm:$0xf]
  %v17 = vld [vmem:[%s0 + $0xc] sm:$0xf]
  %v18 = vld [vmem:[%s0 + $0x10] sm:$0xf]
  %v19 = vld [vmem:[%s0 + $0x14] sm:$0xf]
  %v20 = vld [vmem:[%s0 + $0x18] sm:$0xf]
  %v21 = vld [vmem:[%s0 + $0x1c] sm:$0xf]
  %v22 = vld [vmem:[%s0 + $0x20] sm:$0xf]
  %v23 = vld [vmem:[%s0 + $0x24] sm:$0xf]
  %v24 = vld [vmem:[%s0 + $0x28] sm:$0xf]
  %v25 = vld [vmem:[%s0 + $0x2c] sm:$0xf]
  %v26 = vld [vmem:[%s0 + $0x30] sm:$0xf]
  %v27 = vld [vmem:[%s0 + $0x34] sm:$0xf]
  %v28 = vld [vmem:[%s0 + $0x38] sm:$0xf]
  %v29 = vld [vmem:[%s0 + $0x3c] sm:$0xf]
  %v30 = vld [vmem:[%s1] sm:$0xf]
  %v31 = vld [vmem:[%s1 + $0x4] sm:$0xf]
  %v32 = vld [vmem:[%s1 + $0x8] sm:$0xf]
  %v33 = vld [vmem:[%s1 + $0xc] sm:$0xf]
  %v34 = vld [vmem:[%s1 + $0x10] sm:$0xf]
  %v35 = vld [vmem:[%s1 + $0x14] sm:$0xf]
  %v36 = vld [vmem:[%s1 + $0x18] sm:$0xf]
  %v37 = vld [vmem:[%s1 + $0x1c] sm:$0xf]
  %v38 = vld [vmem:[%s1 + $0x20] sm:$0xf]
  %v39 = vld [vmem:[%s1 + $0x24] sm:$0xf]
  %v40 = vld [vmem:[%s1 + $0x28] sm:$0xf]
  %v41 = vld [vmem:[%s1 + $0x2c] sm:$0xf]
  %v42 = vld [vmem:[%s1 + $0x30] sm:$0xf]
  %v43 = vld [vmem:[%s1 + $0x34] sm:$0xf]
  %v44 = vld [vmem:[%s1 + $0x38] sm:$0xf]
  %v45 = vld [vmem:[%s1 + $0x3c] sm:$0xf]
  %v46 = vld [vmem:[%s2] sm:$0x1]
  %v48 = vperm.slane %v46, 0
  %v66 = vunpack.c.l.b16 %v14
  %v67 = vunpack.c.l.b16 %v15
  %v68 = vunpack.c.l.b16 %v16
  %v69 = vunpack.c.l.b16 %v17
  %v70 = vunpack.c.l.b16 %v18
  %v71 = vunpack.c.l.b16 %v19
  %v72 = vunpack.c.l.b16 %v20
  %v73 = vunpack.c.l.b16 %v21
  %v74 = vunpack.c.l.b16 %v22
  %v75 = vunpack.c.l.b16 %v23
  %v76 = vunpack.c.l.b16 %v24
  %v77 = vunpack.c.l.b16 %v25
  %v78 = vunpack.c.l.b16 %v26
  %v79 = vunpack.c.l.b16 %v27
  %v80 = vunpack.c.l.b16 %v28
  %v81 = vunpack.c.l.b16 %v29
  %v82 = vpack.c.b16 %v67, %v66
  %v83 = vpack.c.b16 %v69, %v68
  %v84 = vpack.c.b16 %v71, %v70
  %v85 = vpack.c.b16 %v73, %v72
  %v86 = vpack.c.b16 %v75, %v74
  %v87 = vpack.c.b16 %v77, %v76
  %v88 = vpack.c.b16 %v79, %v78
  %v89 = vpack.c.b16 %v81, %v80
  %v114 = vunpack.c.l.b16 %v30
  %v115 = vunpack.c.l.b16 %v31
  %v116 = vunpack.c.l.b16 %v32
  %v117 = vunpack.c.l.b16 %v33
  %v118 = vunpack.c.l.b16 %v34
  %v119 = vunpack.c.l.b16 %v35
  %v120 = vunpack.c.l.b16 %v36
  %v121 = vunpack.c.l.b16 %v37
  %v122 = vunpack.c.l.b16 %v38
  %v123 = vunpack.c.l.b16 %v39
  %v124 = vunpack.c.l.b16 %v40
  %v125 = vunpack.c.l.b16 %v41
  %v126 = vunpack.c.l.b16 %v42
  %v127 = vunpack.c.l.b16 %v43
  %v128 = vunpack.c.l.b16 %v44
  %v129 = vunpack.c.l.b16 %v45
  %v130 = vpack.c.b16 %v115, %v114
  %v131 = vpack.c.b16 %v117, %v116
  %v132 = vpack.c.b16 %v119, %v118
  %v133 = vpack.c.b16 %v121, %v120
  %v134 = vpack.c.b16 %v123, %v122
  %v135 = vpack.c.b16 %v125, %v124
  %v136 = vpack.c.b16 %v127, %v126
  %v137 = vpack.c.b16 %v129, %v128
  %146 = vmatpush.bf16.msra.mxu0 %v137
  %147 = vmatpush.bf16.msra.mxu0 %v136
  %148 = vmatpush.bf16.msra.mxu0 %v135
  %149 = vmatpush.bf16.msra.mxu0 %v134
  %150 = vmatpush.bf16.msra.mxu0 %v133
  %151 = vmatpush.bf16.msra.mxu0 %v132
  %152 = vmatpush.bf16.msra.mxu0 %v131
  %153 = vmatpush.bf16.msra.mxu0 %v130
  %154 = vmatmul.bf16.gmra.mxu0 %v82
  %v155 = vpop.f32.mrf.mxu0
  %v156 = vadd.f32 %v48, %v155
  %v157 = vpop.f32.mrf.mxu0
  %v158 = vadd.f32 %v48, %v157
  %159 = vmatmul.bf16.gmra.mxu0 %v83
  %v160 = vpop.f32.mrf.mxu0
  %v161 = vadd.f32 %v48, %v160
  %v162 = vpop.f32.mrf.mxu0
  %v163 = vadd.f32 %v48, %v162
  %164 = vmatmul.bf16.gmra.mxu0 %v84
  %v165 = vpop.f32.mrf.mxu0
  %v166 = vadd.f32 %v48, %v165
  %v167 = vpop.f32.mrf.mxu0
  %v168 = vadd.f32 %v48, %v167
  %169 = vmatmul.bf16.gmra.mxu0 %v85
  %v170 = vpop.f32.mrf.mxu0
  %v171 = vadd.f32 %v48, %v170
  %v172 = vpop.f32.mrf.mxu0
  %v173 = vadd.f32 %v48, %v172
  %174 = vmatmul.bf16.gmra.mxu0 %v86
  %v175 = vpop.f32.mrf.mxu0
  %v176 = vadd.f32 %v48, %v175
  %v177 = vpop.f32.mrf.mxu0
  %v178 = vadd.f32 %v48, %v177
  %179 = vmatmul.bf16.gmra.mxu0 %v87
  %v180 = vpop.f32.mrf.mxu0
  %v181 = vadd.f32 %v48, %v180
  %v182 = vpop.f32.mrf.mxu0
  %v183 = vadd.f32 %v48, %v182
  %184 = vmatmul.bf16.gmra.mxu0 %v88
  %v185 = vpop.f32.mrf.mxu0
  %v186 = vadd.f32 %v48, %v185
  %v187 = vpop.f32.mrf.mxu0
  %v188 = vadd.f32 %v48, %v187
  %189 = vmatmul.bf16.gmra.mxu0 %v89
  %v190 = vpop.f32.mrf.mxu0
  %v191 = vadd.f32 %v48, %v190
  %v192 = vpop.f32.mrf.mxu0
  %v193 = vadd.f32 %v48, %v192
  %194 = vdwg.mxu0
  %v195 = vmax.f32 %v156, 0.0
  %v196 = vmax.f32 %v158, 0.0
  %v197 = vmax.f32 %v161, 0.0
  %v198 = vmax.f32 %v163, 0.0
  %v199 = vmax.f32 %v166, 0.0
  %v200 = vmax.f32 %v168, 0.0
  %v201 = vmax.f32 %v171, 0.0
  %v202 = vmax.f32 %v173, 0.0
  %v203 = vmax.f32 %v176, 0.0
  %v204 = vmax.f32 %v178, 0.0
  %v205 = vmax.f32 %v181, 0.0
  %v206 = vmax.f32 %v183, 0.0
  %v207 = vmax.f32 %v186, 0.0
  %v208 = vmax.f32 %v188, 0.0
  %v209 = vmax.f32 %v191, 0.0
  %v210 = vmax.f32 %v193, 0.0
  %v211 = vpack.c.bf16 %v195, %v195
  %v212 = vpack.c.bf16 %v196, %v196
  %v213 = vpack.c.bf16 %v197, %v197
  %v214 = vpack.c.bf16 %v198, %v198
  %v215 = vpack.c.bf16 %v199, %v199
  %v216 = vpack.c.bf16 %v200, %v200
  %v217 = vpack.c.bf16 %v201, %v201
  %v218 = vpack.c.bf16 %v202, %v202
  %v219 = vpack.c.bf16 %v203, %v203
  %v220 = vpack.c.bf16 %v204, %v204
  %v221 = vpack.c.bf16 %v205, %v205
  %v222 = vpack.c.bf16 %v206, %v206
  %v223 = vpack.c.bf16 %v207, %v207
  %v224 = vpack.c.bf16 %v208, %v208
  %v225 = vpack.c.bf16 %v209, %v209
  %v226 = vpack.c.bf16 %v210, %v210
  %227 = vst [vmem:[%s3] sm:$0xf] %v211
  %228 = vst [vmem:[%s3 + $0x4] sm:$0xf] %v212
  %229 = vst [vmem:[%s3 + $0x8] sm:$0xf] %v213
  %230 = vst [vmem:[%s3 + $0xc] sm:$0xf] %v214
  %231 = vst [vmem:[%s3 + $0x10] sm:$0xf] %v215
  %232 = vst [vmem:[%s3 + $0x14] sm:$0xf] %v216
  %233 = vst [vmem:[%s3 + $0x18] sm:$0xf] %v217
  %234 = vst [vmem:[%s3 + $0x1c] sm:$0xf] %v218
  %235 = vst [vmem:[%s3 + $0x20] sm:$0xf] %v219
  %236 = vst [vmem:[%s3 + $0x24] sm:$0xf] %v220
  %237 = vst [vmem:[%s3 + $0x28] sm:$0xf] %v221
  %238 = vst [vmem:[%s3 + $0x2c] sm:$0xf] %v222
  %239 = vst [vmem:[%s3 + $0x30] sm:$0xf] %v223
  %240 = vst [vmem:[%s3 + $0x34] sm:$0xf] %v224
  %241 = vst [vmem:[%s3 + $0x38] sm:$0xf] %v225
  %242 = vst [vmem:[%s3 + $0x3c] sm:$0xf] %v226
  // Predicated region
  $region14: #{resnet_block_forward.2} parent=0 // pred_check
    _
  $region15: #{resnet_block_forward.2} parent=0 // pred_check_branch
    %244 = sbr.rel (0) target = $region17
  $region16: #{resnet_block_forward.2} parent=0 // pred_region
    _
  $region17: #{resnet_block_forward.2} parent=0 // pred_fallthru
    _
  // Predicated region
  $region18: #{resnet_block_forward.2} parent=0 // pred_check
    _
  $region19: #{resnet_block_forward.2} parent=0 // pred_check_branch
    %246 = sbr.rel (0) target = $region21
  $region20: #{resnet_block_forward.2} parent=0 // pred_region
    _
  $region21: #{resnet_block_forward.2} parent=0 // pred_fallthru
    _

// kernel: resnet_block_forward.3
$region0: #{resnet_block_forward.3}
  #allocation0 [shape = 'u32[]', space=smem, size = 0x4, offset = 0x4, fixed_abs, tag = 'smem constant byte address 0x4 - core index']
  #allocation1 [shape = 'u32[72,128]{1,0:T(1,128)}', space=vmem, size = 0x9000, scoped, tag = 'internal scratch']
  %s0 = inlined_call_operand.vmem [shape: bf16[128,128], index: 0, kind: input, shape index: {}]
  %s1 = inlined_call_operand.vmem [shape: bf16[128,128], index: 1, kind: input, shape index: {}]
  %s2 = inlined_call_operand.vmem [shape: f32[1,128], index: 2, kind: input, shape index: {}]
  %s3 = inlined_call_operand.vmem [shape: bf16[128,16], index: 3, kind: input, shape index: {}]
  %s4 = inlined_call_operand.vmem [shape: bf16[16,128], index: 4, kind: input, shape index: {}]
  %s5 = inlined_call_operand.vmem [shape: f32[1,128], index: 5, kind: input, shape index: {}]
  %s6 = inlined_call_operand.vmem [shape: f32[128,128], index: 6, kind: output, shape index: {}]
  %s7 = sld [smem:[#allocation0]]
  $region34: #{resnet_block_forward.3} parent=0
    _
  %s9 = ssub.s32 1, %s7
  %s10 = scalar_select 0, %s9, %s7
  // Predicated region
  $region2: #{resnet_block_forward.3} parent=0 // pred_check
    _
  $region3: #{resnet_block_forward.3} parent=0 // pred_check_branch
    %12 = sbr.rel (0) target = $region5
  $region4: #{resnet_block_forward.3} parent=0 // pred_region
    _
  $region5: #{resnet_block_forward.3} parent=0 // pred_fallthru
    _
  // Predicated region
  $region6: #{resnet_block_forward.3} parent=0 // pred_check
    _
  $region7: #{resnet_block_forward.3} parent=0 // pred_check_branch
    %14 = sbr.rel (0) target = $region9
  $region8: #{resnet_block_forward.3} parent=0 // pred_region
    _
  $region9: #{resnet_block_forward.3} parent=0 // pred_fallthru
    _
  // Predicated region
  $region10: #{resnet_block_forward.3} parent=0 // pred_check
    _
  $region11: #{resnet_block_forward.3} parent=0 // pred_check_branch
    %16 = sbr.rel (0) target = $region13
  $region12: #{resnet_block_forward.3} parent=0 // pred_region
    _
  $region13: #{resnet_block_forward.3} parent=0 // pred_fallthru
    _
  // Predicated region
  $region14: #{resnet_block_forward.3} parent=0 // pred_check
    _
  $region15: #{resnet_block_forward.3} parent=0 // pred_check_branch
    %18 = sbr.rel (0) target = $region17
  $region16: #{resnet_block_forward.3} parent=0 // pred_region
    _
  $region17: #{resnet_block_forward.3} parent=0 // pred_fallthru
    _
  // Predicated region
  $region18: #{resnet_block_forward.3} parent=0 // pred_check
    _
  $region19: #{resnet_block_forward.3} parent=0 // pred_check_branch
    %20 = sbr.rel (0) target = $region21
  $region20: #{resnet_block_forward.3} parent=0 // pred_region
    _
  $region21: #{resnet_block_forward.3} parent=0 // pred_fallthru
    _
  // Predicated region
  $region22: #{resnet_block_forward.3} parent=0 // pred_check
    _
  $region23: #{resnet_block_forward.3} parent=0 // pred_check_branch
    %22 = sbr.rel (0) target = $region25
  $region24: #{resnet_block_forward.3} parent=0 // pred_region
    _
  $region25: #{resnet_block_forward.3} parent=0 // pred_fallthru
    _
  %v24 = vld [vmem:[%s0] sm:$0xf]
  %v25 = vld [vmem:[%s0 + $0x4] sm:$0xf]
  %v26 = vld [vmem:[%s0 + $0x8] sm:$0xf]
  %v27 = vld [vmem:[%s0 + $0xc] sm:$0xf]
  %v28 = vld [vmem:[%s0 + $0x10] sm:$0xf]
  %v29 = vld [vmem:[%s0 + $0x14] sm:$0xf]
  %v30 = vld [vmem:[%s0 + $0x18] sm:$0xf]
  %v31 = vld [vmem:[%s0 + $0x1c] sm:$0xf]
  %v32 = vld [vmem:[%s0 + $0x20] sm:$0xf]
  %v33 = vld [vmem:[%s0 + $0x24] sm:$0xf]
  %v34 = vld [vmem:[%s0 + $0x28] sm:$0xf]
  %v35 = vld [vmem:[%s0 + $0x2c] sm:$0xf]
  %v36 = vld [vmem:[%s0 + $0x30] sm:$0xf]
  %v37 = vld [vmem:[%s0 + $0x34] sm:$0xf]
  %v38 = vld [vmem:[%s0 + $0x38] sm:$0xf]
  %v39 = vld [vmem:[%s0 + $0x3c] sm:$0xf]
  %v40 = vld [vmem:[%s1] sm:$0xf]
  %v41 = vld [vmem:[%s1 + $0x4] sm:$0xf]
  %v42 = vld [vmem:[%s1 + $0x8] sm:$0xf]
  %v43 = vld [vmem:[%s1 + $0xc] sm:$0xf]
  %v44 = vld [vmem:[%s1 + $0x10] sm:$0xf]
  %v45 = vld [vmem:[%s1 + $0x14] sm:$0xf]
  %v46 = vld [vmem:[%s1 + $0x18] sm:$0xf]
  %v47 = vld [vmem:[%s1 + $0x1c] sm:$0xf]
  %v48 = vld [vmem:[%s1 + $0x20] sm:$0xf]
  %v49 = vld [vmem:[%s1 + $0x24] sm:$0xf]
  %v50 = vld [vmem:[%s1 + $0x28] sm:$0xf]
  %v51 = vld [vmem:[%s1 + $0x2c] sm:$0xf]
  %v52 = vld [vmem:[%s1 + $0x30] sm:$0xf]
  %v53 = vld [vmem:[%s1 + $0x34] sm:$0xf]
  %v54 = vld [vmem:[%s1 + $0x38] sm:$0xf]
  %v55 = vld [vmem:[%s1 + $0x3c] sm:$0xf]
  %v56 = vld [vmem:[%s3] sm:$0xf]
  %v57 = vld [vmem:[%s3 + $0x4] sm:$0xf]
  %v58 = vld [vmem:[%s3 + $0x8] sm:$0xf]
  %v59 = vld [vmem:[%s3 + $0xc] sm:$0xf]
  %v60 = vld [vmem:[%s3 + $0x10] sm:$0xf]
  %v61 = vld [vmem:[%s3 + $0x14] sm:$0xf]
  %v62 = vld [vmem:[%s3 + $0x18] sm:$0xf]
  %v63 = vld [vmem:[%s3 + $0x1c] sm:$0xf]
  %v64 = vld [vmem:[%s3 + $0x20] sm:$0xf]
  %v65 = vld [vmem:[%s3 + $0x24] sm:$0xf]
  %v66 = vld [vmem:[%s3 + $0x28] sm:$0xf]
  %v67 = vld [vmem:[%s3 + $0x2c] sm:$0xf]
  %v68 = vld [vmem:[%s3 + $0x30] sm:$0xf]
  %v69 = vld [vmem:[%s3 + $0x34] sm:$0xf]
  %v70 = vld [vmem:[%s3 + $0x38] sm:$0xf]
  %v71 = vld [vmem:[%s3 + $0x3c] sm:$0xf]
  %v72 = vld [vmem:[%s4] sm:$0xf]
  %v73 = vld [vmem:[%s4 + $0x4] sm:$0xf]
  %v74 = vld [vmem:[%s2] sm:$0x1]
  %v76 = vperm.slane %v74, 0
  %v94 = vunpack.c.l.b16 %v24
  %v95 = vunpack.c.l.b16 %v25
  %v96 = vunpack.c.l.b16 %v26
  %v97 = vunpack.c.l.b16 %v27
  %v98 = vunpack.c.l.b16 %v28
  %v99 = vunpack.c.l.b16 %v29
  %v100 = vunpack.c.l.b16 %v30
  %v101 = vunpack.c.l.b16 %v31
  %v102 = vunpack.c.l.b16 %v32
  %v103 = vunpack.c.l.b16 %v33
  %v104 = vunpack.c.l.b16 %v34
  %v105 = vunpack.c.l.b16 %v35
  %v106 = vunpack.c.l.b16 %v36
  %v107 = vunpack.c.l.b16 %v37
  %v108 = vunpack.c.l.b16 %v38
  %v109 = vunpack.c.l.b16 %v39
  %v110 = vpack.c.b16 %v95, %v94
  %v111 = vpack.c.b16 %v97, %v96
  %v112 = vpack.c.b16 %v99, %v98
  %v113 = vpack.c.b16 %v101, %v100
  %v114 = vpack.c.b16 %v103, %v102
  %v115 = vpack.c.b16 %v105, %v104
  %v116 = vpack.c.b16 %v107, %v106
  %v117 = vpack.c.b16 %v109, %v108
  %v142 = vunpack.c.l.b16 %v40
  %v143 = vunpack.c.l.b16 %v41
  %v144 = vunpack.c.l.b16 %v42
  %v145 = vunpack.c.l.b16 %v43
  %v146 = vunpack.c.l.b16 %v44
  %v147 = vunpack.c.l.b16 %v45
  %v148 = vunpack.c.l.b16 %v46
  %v149 = vunpack.c.l.b16 %v47
  %v150 = vunpack.c.l.b16 %v48
  %v151 = vunpack.c.l.b16 %v49
  %v152 = vunpack.c.l.b16 %v50
  %v153 = vunpack.c.l.b16 %v51
  %v154 = vunpack.c.l.b16 %v52
  %v155 = vunpack.c.l.b16 %v53
  %v156 = vunpack.c.l.b16 %v54
  %v157 = vunpack.c.l.b16 %v55
  %v158 = vpack.c.b16 %v143, %v142
  %v159 = vpack.c.b16 %v145, %v144
  %v160 = vpack.c.b16 %v147, %v146
  %v161 = vpack.c.b16 %v149, %v148
  %v162 = vpack.c.b16 %v151, %v150
  %v163 = vpack.c.b16 %v153, %v152
  %v164 = vpack.c.b16 %v155, %v154
  %v165 = vpack.c.b16 %v157, %v156
  %174 = vmatpush.bf16.msra.mxu0 %v165
  %175 = vmatpush.bf16.msra.mxu0 %v164
  %176 = vmatpush.bf16.msra.mxu0 %v163
  %177 = vmatpush.bf16.msra.mxu0 %v162
  %178 = vmatpush.bf16.msra.mxu0 %v161
  %179 = vmatpush.bf16.msra.mxu0 %v160
  %180 = vmatpush.bf16.msra.mxu0 %v159
  %181 = vmatpush.bf16.msra.mxu0 %v158
  %182 = vmatmul.bf16.gmra.mxu0 %v110
  %v183 = vpop.f32.mrf.mxu0
  %v184 = vadd.f32 %v76, %v183
  %v185 = vpop.f32.mrf.mxu0
  %v186 = vadd.f32 %v76, %v185
  %187 = vmatmul.bf16.gmra.mxu0 %v111
  %v188 = vpop.f32.mrf.mxu0
  %v189 = vadd.f32 %v76, %v188
  %v190 = vpop.f32.mrf.mxu0
  %v191 = vadd.f32 %v76, %v190
  %192 = vmatmul.bf16.gmra.mxu0 %v112
  %v193 = vpop.f32.mrf.mxu0
  %v194 = vadd.f32 %v76, %v193
  %v195 = vpop.f32.mrf.mxu0
  %v196 = vadd.f32 %v76, %v195
  %197 = vmatmul.bf16.gmra.mxu0 %v113
  %v198 = vpop.f32.mrf.mxu0
  %v199 = vadd.f32 %v76, %v198
  %v200 = vpop.f32.mrf.mxu0
  %v201 = vadd.f32 %v76, %v200
  %202 = vmatmul.bf16.gmra.mxu0 %v114
  %v203 = vpop.f32.mrf.mxu0
  %v204 = vadd.f32 %v76, %v203
  %v205 = vpop.f32.mrf.mxu0
  %v206 = vadd.f32 %v76, %v205
  %207 = vmatmul.bf16.gmra.mxu0 %v115
  %v208 = vpop.f32.mrf.mxu0
  %v209 = vadd.f32 %v76, %v208
  %v210 = vpop.f32.mrf.mxu0
  %v211 = vadd.f32 %v76, %v210
  %212 = vmatmul.bf16.gmra.mxu0 %v116
  %v213 = vpop.f32.mrf.mxu0
  %v214 = vadd.f32 %v76, %v213
  %v215 = vpop.f32.mrf.mxu0
  %v216 = vadd.f32 %v76, %v215
  %217 = vmatmul.bf16.gmra.mxu0 %v117
  %v218 = vpop.f32.mrf.mxu0
  %v219 = vadd.f32 %v76, %v218
  %v220 = vpop.f32.mrf.mxu0
  %v221 = vadd.f32 %v76, %v220
  %222 = vdwg.mxu0
  %v223 = vmax.f32 %v184, 0.0
  %v224 = vmax.f32 %v186, 0.0
  %v225 = vmax.f32 %v189, 0.0
  %v226 = vmax.f32 %v191, 0.0
  %v227 = vmax.f32 %v194, 0.0
  %v228 = vmax.f32 %v196, 0.0
  %v229 = vmax.f32 %v199, 0.0
  %v230 = vmax.f32 %v201, 0.0
  %v231 = vmax.f32 %v204, 0.0
  %v232 = vmax.f32 %v206, 0.0
  %v233 = vmax.f32 %v209, 0.0
  %v234 = vmax.f32 %v211, 0.0
  %v235 = vmax.f32 %v214, 0.0
  %v236 = vmax.f32 %v216, 0.0
  %v237 = vmax.f32 %v219, 0.0
  %v238 = vmax.f32 %v221, 0.0
  %v239 = vld [vmem:[%s5] sm:$0x1]
  %v241 = vperm.slane %v239, 0
  %v259 = vunpack.c.l.b16 %v56
  %v260 = vunpack.c.l.b16 %v57
  %v261 = vunpack.c.l.b16 %v58
  %v262 = vunpack.c.l.b16 %v59
  %v263 = vunpack.c.l.b16 %v60
  %v264 = vunpack.c.l.b16 %v61
  %v265 = vunpack.c.l.b16 %v62
  %v266 = vunpack.c.l.b16 %v63
  %v267 = vunpack.c.l.b16 %v64
  %v268 = vunpack.c.l.b16 %v65
  %v269 = vunpack.c.l.b16 %v66
  %v270 = vunpack.c.l.b16 %v67
  %v271 = vunpack.c.l.b16 %v68
  %v272 = vunpack.c.l.b16 %v69
  %v273 = vunpack.c.l.b16 %v70
  %v274 = vunpack.c.l.b16 %v71
  %v275 = vpack.c.b16 %v260, %v259
  %v276 = vpack.c.b16 %v262, %v261
  %v277 = vpack.c.b16 %v264, %v263
  %v278 = vpack.c.b16 %v266, %v265
  %v279 = vpack.c.b16 %v268, %v267
  %v280 = vpack.c.b16 %v270, %v269
  %v281 = vpack.c.b16 %v272, %v271
  %v282 = vpack.c.b16 %v274, %v273
  %v285 = vunpack.c.l.b16 %v72
  %v286 = vunpack.c.l.b16 %v73
  %v287 = vpack.c.b16 %v286, %v285
  %vm289 = vcmask 130048
  %v291 = vsel %vm289, %v275, 0
  %v294 = vsel %vm289, %v276, 0
  %v297 = vsel %vm289, %v277, 0
  %v300 = vsel %vm289, %v278, 0
  %v303 = vsel %vm289, %v279, 0
  %v306 = vsel %vm289, %v280, 0
  %v309 = vsel %vm289, %v281, 0
  %v312 = vsel %vm289, %v282, 0
  %314 = vmatpush.bf16.msra.mxu0 0
  %315 = vmatpush.bf16.msra.mxu0 0
  %316 = vmatpush.bf16.msra.mxu0 0
  %317 = vmatpush.bf16.msra.mxu0 0
  %318 = vmatpush.bf16.msra.mxu0 0
  %319 = vmatpush.bf16.msra.mxu0 0
  %320 = vmatpush.bf16.msra.mxu0 0
  %321 = vmatpush.bf16.msra.mxu0 %v287
  %322 = vmatmul.bf16.gmra.mxu0 %v291
  %v323 = vpop.f32.mrf.mxu0
  %v324 = vadd.f32 %v241, %v323
  %v325 = vpop.f32.mrf.mxu0
  %v326 = vadd.f32 %v241, %v325
  %327 = vmatmul.bf16.gmra.mxu0 %v294
  %v328 = vpop.f32.mrf.mxu0
  %v329 = vadd.f32 %v241, %v328
  %v330 = vpop.f32.mrf.mxu0
  %v331 = vadd.f32 %v241, %v330
  %332 = vmatmul.bf16.gmra.mxu0 %v297
  %v333 = vpop.f32.mrf.mxu0
  %v334 = vadd.f32 %v241, %v333
  %v335 = vpop.f32.mrf.mxu0
  %v336 = vadd.f32 %v241, %v335
  %337 = vmatmul.bf16.gmra.mxu0 %v300
  %v338 = vpop.f32.mrf.mxu0
  %v339 = vadd.f32 %v241, %v338
  %v340 = vpop.f32.mrf.mxu0
  %v341 = vadd.f32 %v241, %v340
  %342 = vmatmul.bf16.gmra.mxu0 %v303
  %v343 = vpop.f32.mrf.mxu0
  %v344 = vadd.f32 %v241, %v343
  %v345 = vpop.f32.mrf.mxu0
  %v346 = vadd.f32 %v241, %v345
  %347 = vmatmul.bf16.gmra.mxu0 %v306
  %v348 = vpop.f32.mrf.mxu0
  %v349 = vadd.f32 %v241, %v348
  %v350 = vpop.f32.mrf.mxu0
  %v351 = vadd.f32 %v241, %v350
  %352 = vmatmul.bf16.gmra.mxu0 %v309
  %v353 = vpop.f32.mrf.mxu0
  %v354 = vadd.f32 %v241, %v353
  %v355 = vpop.f32.mrf.mxu0
  %v356 = vadd.f32 %v241, %v355
  %357 = vmatmul.bf16.gmra.mxu0 %v312
  %v358 = vpop.f32.mrf.mxu0
  %v359 = vadd.f32 %v241, %v358
  %v360 = vpop.f32.mrf.mxu0
  %v361 = vadd.f32 %v241, %v360
  %362 = vdwg.mxu0
  %v363 = vmax.f32 %v324, 0.0
  %v364 = vmax.f32 %v326, 0.0
  %v365 = vmax.f32 %v329, 0.0
  %v366 = vmax.f32 %v331, 0.0
  %v367 = vmax.f32 %v334, 0.0
  %v368 = vmax.f32 %v336, 0.0
  %v369 = vmax.f32 %v339, 0.0
  %v370 = vmax.f32 %v341, 0.0
  %v371 = vmax.f32 %v344, 0.0
  %v372 = vmax.f32 %v346, 0.0
  %v373 = vmax.f32 %v349, 0.0
  %v374 = vmax.f32 %v351, 0.0
  %v375 = vmax.f32 %v354, 0.0
  %v376 = vmax.f32 %v356, 0.0
  %v377 = vmax.f32 %v359, 0.0
  %v378 = vmax.f32 %v361, 0.0
  %v379 = vadd.f32 %v223, %v363
  %v380 = vadd.f32 %v224, %v364
  %v381 = vadd.f32 %v225, %v365
  %v382 = vadd.f32 %v226, %v366
  %v383 = vadd.f32 %v227, %v367
  %v384 = vadd.f32 %v228, %v368
  %v385 = vadd.f32 %v229, %v369
  %v386 = vadd.f32 %v230, %v370
  %v387 = vadd.f32 %v231, %v371
  %v388 = vadd.f32 %v232, %v372
  %v389 = vadd.f32 %v233, %v373
  %v390 = vadd.f32 %v234, %v374
  %v391 = vadd.f32 %v235, %v375
  %v392 = vadd.f32 %v236, %v376
  %v393 = vadd.f32 %v237, %v377
  %v394 = vadd.f32 %v238, %v378
  %395 = vst [vmem:[%s6] sm:$0xff] %v379
  %396 = vst [vmem:[%s6 + $0x8] sm:$0xff] %v380
  %397 = vst [vmem:[%s6 + $0x10] sm:$0xff] %v381
  %398 = vst [vmem:[%s6 + $0x18] sm:$0xff] %v382
  %399 = vst [vmem:[%s6 + $0x20] sm:$0xff] %v383
  %400 = vst [vmem:[%s6 + $0x28] sm:$0xff] %v384
  %401 = vst [vmem:[%s6 + $0x30] sm:$0xff] %v385
  %402 = vst [vmem:[%s6 + $0x38] sm:$0xff] %v386
  %403 = vst [vmem:[%s6 + $0x40] sm:$0xff] %v387
  %404 = vst [vmem:[%s6 + $0x48] sm:$0xff] %v388
  %405 = vst [vmem:[%s6 + $0x50] sm:$0xff] %v389
  %406 = vst [vmem:[%s6 + $0x58] sm:$0xff] %v390
  %407 = vst [vmem:[%s6 + $0x60] sm:$0xff] %v391
  %408 = vst [vmem:[%s6 + $0x68] sm:$0xff] %v392
  %409 = vst [vmem:[%s6 + $0x70] sm:$0xff] %v393
  %410 = vst [vmem:[%s6 + $0x78] sm:$0xff] %v394
  // Predicated region
  $region26: #{resnet_block_forward.3} parent=0 // pred_check
    _
  $region27: #{resnet_block_forward.3} parent=0 // pred_check_branch
    %412 = sbr.rel (0) target = $region29
  $region28: #{resnet_block_forward.3} parent=0 // pred_region
    _
  $region29: #{resnet_block_forward.3} parent=0 // pred_fallthru
    _
  // Predicated region
  $region30: #{resnet_block_forward.3} parent=0 // pred_check
    _
  $region31: #{resnet_block_forward.3} parent=0 // pred_check_branch
    %414 = sbr.rel (0) target = $region33
  $region32: #{resnet_block_forward.3} parent=0 // pred_region
    _
  $region33: #{resnet_block_forward.3} parent=0 // pred_fallthru
    _

</llo_original>
